<compile_context>
chip_gen: v6e
topology: v6e:2x2x1
jax: 0.10.0
libtpu: 0.0.40
codegen_flags: <defaults>
</compile_context>

<pallas_src>
import jax
import jax.numpy as jnp
from jax.experimental import pallas as pl
from jax.experimental.pallas import tpu as pltpu


def _relu_kernel(x_ref, o_ref):
    # Pure elementwise VPU op on the current (tile_rows, lanes) block.
    o_ref[...] = jnp.maximum(x_ref[...], jnp.zeros((), dtype=x_ref.dtype))


def relu_pallas(x: jax.Array) -> jax.Array:
    """Elementwise ReLU on an arbitrary-shaped array via a Pallas TPU kernel."""
    orig_shape = x.shape
    dtype = x.dtype
    total = int(x.size)
    if total == 0:
        return x

    itemsize = int(jnp.dtype(dtype).itemsize)
    # Packed-sublane granule: 8 rows (f32), 16 (bf16/f16), 32 (int8/fp8).
    sublane = max(8, 32 // max(itemsize, 1))

    # ---- 1) Lane-dense 2D slab (no extra HBM copies in the common case) ----
    lanes = None
    for cand in (1024, 512, 256, 128):
        if total % cand == 0:
            lanes = cand
            break

    if lanes is None:
        # Rare fallback: element count not a multiple of 128 -> pad once.
        lanes = 128
        granule = sublane * lanes
        padded = ((total + granule - 1) // granule) * granule
        x2d = jnp.pad(jnp.ravel(x), (0, padded - total)).reshape(-1, lanes)
        valid = total
    else:
        # Free (layout-preserving) reshape: no padding, no slicing afterwards.
        x2d = jnp.ravel(x).reshape(-1, lanes)
        valid = None

    rows = x2d.shape[0]

    # ---- 2) Tile selection: ~1 MiB blocks, dtype-aware granule --------------
    target_block_bytes = 1 << 20
    tile_rows = (target_block_bytes // (lanes * itemsize)) // sublane * sublane
    tile_rows = max(sublane, tile_rows)
    if tile_rows >= rows:
        if rows >= 2 * sublane:
            # Small input: still give the grid >= 2 steps (keeps both v7x TCs fed).
            half = (rows + 1) // 2
            tile_rows = ((half + sublane - 1) // sublane) * sublane
        else:
            # Tiny input: single full-extent block (allowed even if < 8 rows).
            tile_rows = rows

    grid = (pl.cdiv(rows, tile_rows),)

    out2d = pl.pallas_call(
        _relu_kernel,
        out_shape=jax.ShapeDtypeStruct((rows, lanes), dtype),
        grid_spec=pltpu.PrefetchScalarGridSpec(
            num_scalar_prefetch=0,
            grid=grid,
            in_specs=[pl.BlockSpec((tile_rows, lanes), lambda i: (i, 0))],
            out_specs=pl.BlockSpec((tile_rows, lanes), lambda i: (i, 0)),
        ),
        compiler_params=pltpu.CompilerParams(
            dimension_semantics=("parallel",),
        ),
    )(x2d)

    out_flat = out2d.reshape(-1)
    if valid is not None:
        out_flat = out_flat[:valid]
    return out_flat.reshape(orig_shape)


class M:
    """JAX/Pallas equivalent of the PyTorch module (ReLU only, no params)."""

    def __call__(self, x118):
        return relu_pallas(x118)


if __name__ == "__main__":
    key = jax.random.PRNGKey(0)
    model = M()

    # Small NCHW input consistent with the module's forward
    # (original was [1, 1056, 28, 28]); reduced channel count for smoke test.
    x118 = jax.random.normal(key, (1, 64, 28, 28), dtype=jnp.float32)
    y = jax.block_until_ready(model(x118))
    ref = jnp.maximum(x118, 0.0)
    assert y.shape == x118.shape and y.dtype == x118.dtype
    assert bool(jnp.all(y == ref))

    # Awkward size (not a multiple of 128 elements) -> exercises the padded
    # fallback path and the boundary-masked partial block handling.
    x_odd = jax.random.normal(jax.random.PRNGKey(1), (2, 3, 5, 7), dtype=jnp.float32)
    y_odd = jax.block_until_ready(model(x_odd))
    assert y_odd.shape == x_odd.shape
    assert bool(jnp.all(y_odd == jnp.maximum(x_odd, 0.0)))

    print("KERNEL_OK")
</pallas_src>

<mosaic_0001>
module attributes {stable_mosaic.version = 11 : i64} {
  func.func @_relu_kernel(%arg0: i32, %arg1: memref<32x1024xf32, #tpu.memory_space<vmem>>, %arg2: memref<32x1024xf32, #tpu.memory_space<vmem>>) attributes {dimension_semantics = [#tpu.dimension_semantics<parallel>], iteration_bounds = array<i64: 2>, scalar_prefetch = 0 : i64, scratch_operands = 0 : i64, tpu.core_type = #tpu.core_type<tc>, window_params = [{transform_indices = @transform_0, window_bounds = array<i64: 32, 1024>}, {transform_indices = @transform_1, window_bounds = array<i64: 32, 1024>}]} {
    %c0 = arith.constant 0 : index
    %c0_0 = arith.constant 0 : index
    %0 = vector.load %arg1[%c0, %c0_0] : memref<32x1024xf32, #tpu.memory_space<vmem>>, vector<32x1024xf32>
    %cst = arith.constant 0.000000e+00 : f32
    %1 = vector.broadcast %cst : f32 to vector<32x1024xf32>
    %2 = arith.maximumf %0, %1 : vector<32x1024xf32>
    %c0_1 = arith.constant 0 : index
    %c0_2 = arith.constant 0 : index
    %3 = vector.load %arg2[%c0_1, %c0_2] : memref<32x1024xf32, #tpu.memory_space<vmem>>, vector<32x1024xf32>
    tpu.vector_store %arg2[%c0_1, %c0_2], %2 {strides = array<i32>} : memref<32x1024xf32, #tpu.memory_space<vmem>>, vector<32x1024xf32>,
    return
  }
  func.func @transform_0(%arg0: i32) -> (i32, i32) {
    %c0_i32 = arith.constant 0 : i32
    %c0_i32_0 = arith.constant 0 : i32
    return %arg0, %c0_i32 : i32, i32
  }
  func.func @transform_1(%arg0: i32) -> (i32, i32) {
    %c0_i32 = arith.constant 0 : i32
    %c0_i32_0 = arith.constant 0 : i32
    return %arg0, %c0_i32 : i32, i32
  }
}

</mosaic_0001>

<llo_original>
// kernel: tpu_custom_call.1
$region0: #{tpu_custom_call.1}
  #allocation0 [shape = 'u32[]', space=smem, size = 0x4, offset = 0x4, fixed_abs, tag = 'smem constant byte address 0x4 - core index']
  #allocation1 [shape = 'u32[144,128]{1,0:T(1,128)}', space=vmem, size = 0x12000, scoped, tag = 'internal scratch']
  %s0 = inlined_call_operand.hbm [shape: f32[49,1024], index: 0, kind: input, shape index: {}]
  %s1 = inlined_call_operand.hbm [shape: f32[49,1024], index: 1, kind: output, shape index: {}]
  %s2 = sld [smem:[#allocation0]]
  $region41: #{tpu_custom_call.1} parent=0
    _
  %s4 = ssub.s32 1, %s2
  %s5 = scalar_select 0, %s4, %s2
  $region1: #{tpu_custom_call.1} parent=0
    #allocation2 [shape = 'u8[262144]{0}', space=vmem, size = 0x40000, scoped, tag = 'input window, operand 0']
    #allocation3 [shape = 's32[2]{0}', space=sflag, size = 0x8, scoped, tag = 'scoped memory for tpu_custom_call.1']
    #allocation4 [shape = 's32[2]{0}', space=sflag, size = 0x8, scoped, tag = 'scoped memory for tpu_custom_call.1']
    #allocation5 [shape = 'u8[262144]{0}', space=vmem, size = 0x40000, scoped, tag = 'output window, operand 0']
    %6 = vsyncpa [#allocation3], 0
    %s7 = scalar_lea.sflag [#allocation3], 1
    %8 = vsyncpa %s7, 0
    %9 = vsyncpa [#allocation4], 0
    %s10 = scalar_lea.sflag [#allocation4], 1
    %11 = vsyncpa %s10, 0
    loop: start=0, step=1, limit=4
    $region2: #{tpu_custom_call.1} parent=1 // loop_pre_header
      _
    $region3: #{tpu_custom_call.1} parent=1 // loop_header
      %s13 = sphi 0, %s17
      %p14 = scmp.ge.s32.totalorder %s13, 4
      %s23 = sphi 0, %s25
      %s26 = sphi 0, %s23
      %s27 = sphi 0, %s26
      %s43 = sphi 0, %s27
      %s49 = sphi 0, %s51
      %s52 = sphi 0, %s49
      %s53 = sphi 0, %s52
      %s69 = sphi 0, %s53
    $region4: #{tpu_custom_call.1} parent=1 // loop_header_branch
      %16 = sbr.rel (%p14) target = $region8
    $region5: #{tpu_custom_call.1} parent=1 // loop_body
      %s18 = ssub.s32 %s13, 1
      %s19 = ssub.s32 %s13, 2
      %s20 = sadd.s32 %s13, 1
      %s21 = ssub.s32 %s13, %s20
      %p22 = scmp.eq.s32.totalorder %s21, 0
      %s24 = sadd.s32 %s23, 1
      %s25 = scalar_select %p22, %s23, %s24
      %p28 = pneg %p22
      %p29 = scmp.eq.s32.totalorder %s13, 1
      %p30 = por %p28, %p29
      %p31 = scmp.ne.s32.totalorder %s23, %s26
      %p32 = scmp.eq.s32.totalorder %s13, 0
      %p33 = por %p31, %p32
      %p34 = scmp.ne.s32.totalorder %s23, %s26
      %p35 = scmp.eq.s32.totalorder %s18, 1
      %p36 = por %p34, %p35
      %p37 = scmp.ne.s32.totalorder %s26, %s27
      %p38 = scmp.eq.s32.totalorder %s18, 0
      %p39 = por %p37, %p38
      %p40 = scmp.ne.s32.totalorder %s26, %s27
      %p41 = scmp.eq.s32.totalorder %s19, 1
      %p42 = por %p40, %p41
      %p44 = scmp.ne.s32.totalorder %s27, %s43
      %p45 = scmp.eq.s32.totalorder %s19, 0
      %p46 = por %p44, %p45
      %s47 = ssub.s32 %s13, %s20
      %p48 = scmp.eq.s32.totalorder %s47, 0
      %s50 = sadd.s32 %s49, 1
      %s51 = scalar_select %p48, %s49, %s50
      %p54 = pneg %p48
      %p55 = scmp.eq.s32.totalorder %s13, 1
      %p56 = por %p54, %p55
      %p57 = scmp.ne.s32.totalorder %s49, %s52
      %p58 = scmp.eq.s32.totalorder %s13, 0
      %p59 = por %p57, %p58
      %p60 = scmp.ne.s32.totalorder %s49, %s52
      %p61 = scmp.eq.s32.totalorder %s18, 1
      %p62 = por %p60, %p61
      %p63 = scmp.ne.s32.totalorder %s52, %s53
      %p64 = scmp.eq.s32.totalorder %s18, 0
      %p65 = por %p63, %p64
      %p66 = scmp.ne.s32.totalorder %s52, %s53
      %p67 = scmp.eq.s32.totalorder %s19, 1
      %p68 = por %p66, %p67
      %p70 = scmp.ne.s32.totalorder %s53, %s69
      %p71 = scmp.eq.s32.totalorder %s19, 0
      %p72 = por %p70, %p71
      %p73 = scmp.le.s32.totalorder 1, %s13
      %p74 = scmp.lt.s32.totalorder %s13, 3
      %p75 = pnand %p73, %p74
      %p76 = pneg %p75
      // Predicated region
      $region9: #{tpu_custom_call.1} parent=5 // pred_check
        _
      $region10: #{tpu_custom_call.1} parent=5 // pred_check_branch
        %78 = sbr.rel (%p75) target = $region12
      $region11: #{tpu_custom_call.1} parent=5 // pred_region
        %s79 = ssub.s32 %s13, 1
      $region12: #{tpu_custom_call.1} parent=5 // pred_fallthru
        _
      %p80 = scmp.lt.s32.totalorder %s13, 2
      // Predicated region
      $region13: #{tpu_custom_call.1} parent=5 // pred_check
        %p81 = pneg %p80
      $region14: #{tpu_custom_call.1} parent=5 // pred_check_branch
        %83 = sbr.rel (%p81) target = $region16
      $region15: #{tpu_custom_call.1} parent=5 // pred_region
        // Predicated region
        $region17: #{tpu_custom_call.1} parent=15 // pred_check
          %p84 = pneg %p33
        $region18: #{tpu_custom_call.1} parent=15 // pred_check_branch
          %86 = sbr.rel (%p84) target = $region20
        $region19: #{tpu_custom_call.1} parent=15 // pred_region
          %s87 = sand.u32 %s23, 1
          %s88 = scalar_lea.sflag [#allocation3], %s87
          %s89 = sand.u32 %s23, 1
          %s90 = smul.addr %s89, 256
          %s91 = scalar_lea.vmem [#allocation2], %s90
          %s92 = smul.u32 4, %s13
          %s93 = ssub.s32 7, %s92
          %p94 = scmp.lt.s32.totalorder %s93, 4
          %s95 = scalar_select %p94, %s93, 4
          %s96 = smul.u32 128, %s95
          %s97 = smul.u32 %s96, 8
          %s99 = ssub.s32 4096, %s97
          %100 = vsyncadd %s88, %s99
          %p101 = scmp.ne.s32.totalorder 0, %s97
          %s102 = smul.addr %s92, 8
          %s103 = smul.addr %s102, 128
          %s104 = scalar_lea.hbm %s0, %s103
          %s105 = smul.u32 64, %s95
          %s106 = sshll.u32 %s91, 4
          %s107 = int_to_ptr.vmem [resolvable:$true] %s106
          %s108 = sshll.u32 %s105, 4
          %112 = dma.hbm_to_vmem [thread:$0]  (%p101), %s104, %s108, %s107, %s88, 1024, 1024, 64
        $region20: #{tpu_custom_call.1} parent=15 // pred_fallthru
          _
      $region16: #{tpu_custom_call.1} parent=5 // pred_fallthru
        _
      %p113 = scmp.le.s32.totalorder 1, %s13
      %p114 = scmp.lt.s32.totalorder %s13, 3
      %p115 = pnand %p113, %p114
      %p116 = pneg %p115
      // Predicated region
      $region21: #{tpu_custom_call.1} parent=5 // pred_check
        _
      $region22: #{tpu_custom_call.1} parent=5 // pred_check_branch
        %118 = sbr.rel (%p115) target = $region24
      $region23: #{tpu_custom_call.1} parent=5 // pred_region
        %s119 = ssub.s32 %s13, 1
        %s120 = sand.u32 %s26, 1
        %s121 = scalar_lea.sflag [#allocation3], %s120
        %s122 = sand.u32 %s26, 1
        %s123 = smul.addr %s122, 256
        %s124 = scalar_lea.vmem [#allocation2], %s123
        // Predicated region
        $region25: #{tpu_custom_call.1} parent=23 // pred_check
          %p125 = pneg %p39
        $region26: #{tpu_custom_call.1} parent=23 // pred_check_branch
          %127 = sbr.rel (%p125) target = $region28
        $region27: #{tpu_custom_call.1} parent=23 // pred_region
          %128 = dma.done %s121, 4096
        $region28: #{tpu_custom_call.1} parent=23 // pred_fallthru
          _
        %s129 = sand.u32 %s26, 1
        %s130 = scalar_lea.sflag [#allocation3], %s129
        %s131 = sand.u32 %s26, 1
        %s132 = smul.addr %s131, 256
        %s133 = scalar_lea.vmem [#allocation2], %s132
        %p134 = pneg %p39
        %p135 = pneg %p36
        %p136 = pneg %p65
        %p137 = pneg %p62
        %s138 = sand.u32 %s52, 1
        %s139 = scalar_lea.sflag [#allocation4], %s138
        %s140 = sand.u32 %s52, 1
        %s141 = smul.addr %s140, 256
        %s142 = scalar_lea.vmem [#allocation5], %s141
        %s143 = smul.u32 4, %s18
        %s144 = ssub.s32 7, %s143
        %p145 = scmp.lt.s32.totalorder %s144, 4
        %s146 = scalar_select %p145, %s144, 4
        %s147 = smul.u32 128, %s146
        %s148 = smul.u32 %s147, 8
        %s149 = smul.u32 4, %s18
        %s150 = ssub.s32 7, %s149
        %p151 = scmp.lt.s32.totalorder %s150, 4
        %s152 = scalar_select %p151, %s150, 4
        %s153 = smul.u32 128, %s152
        %s154 = smul.u32 %s153, 8
        %v155 = vld [vmem:[%s124] sm:$0xff]
        %v156 = vld [vmem:[%s124 + $0x8] sm:$0xff]
        %v157 = vld [vmem:[%s124 + $0x10] sm:$0xff]
        %v158 = vld [vmem:[%s124 + $0x18] sm:$0xff]
        %v159 = vld [vmem:[%s124 + $0x20] sm:$0xff]
        %v160 = vld [vmem:[%s124 + $0x28] sm:$0xff]
        %v161 = vld [vmem:[%s124 + $0x30] sm:$0xff]
        %v162 = vld [vmem:[%s124 + $0x38] sm:$0xff]
        %v163 = vld [vmem:[%s124 + $0x40] sm:$0xff]
        %v164 = vld [vmem:[%s124 + $0x48] sm:$0xff]
        %v165 = vld [vmem:[%s124 + $0x50] sm:$0xff]
        %v166 = vld [vmem:[%s124 + $0x58] sm:$0xff]
        %v167 = vld [vmem:[%s124 + $0x60] sm:$0xff]
        %v168 = vld [vmem:[%s124 + $0x68] sm:$0xff]
        %v169 = vld [vmem:[%s124 + $0x70] sm:$0xff]
        %v170 = vld [vmem:[%s124 + $0x78] sm:$0xff]
        %v171 = vld [vmem:[%s124 + $0x80] sm:$0xff]
        %v172 = vld [vmem:[%s124 + $0x88] sm:$0xff]
        %v173 = vld [vmem:[%s124 + $0x90] sm:$0xff]
        %v174 = vld [vmem:[%s124 + $0x98] sm:$0xff]
        %v175 = vld [vmem:[%s124 + $0xa0] sm:$0xff]
        %v176 = vld [vmem:[%s124 + $0xa8] sm:$0xff]
        %v177 = vld [vmem:[%s124 + $0xb0] sm:$0xff]
        %v178 = vld [vmem:[%s124 + $0xb8] sm:$0xff]
        %v179 = vld [vmem:[%s124 + $0xc0] sm:$0xff]
        %v180 = vld [vmem:[%s124 + $0xc8] sm:$0xff]
        %v181 = vld [vmem:[%s124 + $0xd0] sm:$0xff]
        %v182 = vld [vmem:[%s124 + $0xd8] sm:$0xff]
        %v183 = vld [vmem:[%s124 + $0xe0] sm:$0xff]
        %v184 = vld [vmem:[%s124 + $0xe8] sm:$0xff]
        %v185 = vld [vmem:[%s124 + $0xf0] sm:$0xff]
        %v186 = vld [vmem:[%s124 + $0xf8] sm:$0xff]
        %v187 = vmax.f32 %v155, 0.0
        %v188 = vmax.f32 %v156, 0.0
        %v189 = vmax.f32 %v157, 0.0
        %v190 = vmax.f32 %v158, 0.0
        %v191 = vmax.f32 %v159, 0.0
        %v192 = vmax.f32 %v160, 0.0
        %v193 = vmax.f32 %v161, 0.0
        %v194 = vmax.f32 %v162, 0.0
        %v195 = vmax.f32 %v163, 0.0
        %v196 = vmax.f32 %v164, 0.0
        %v197 = vmax.f32 %v165, 0.0
        %v198 = vmax.f32 %v166, 0.0
        %v199 = vmax.f32 %v167, 0.0
        %v200 = vmax.f32 %v168, 0.0
        %v201 = vmax.f32 %v169, 0.0
        %v202 = vmax.f32 %v170, 0.0
        %v203 = vmax.f32 %v171, 0.0
        %v204 = vmax.f32 %v172, 0.0
        %v205 = vmax.f32 %v173, 0.0
        %v206 = vmax.f32 %v174, 0.0
        %v207 = vmax.f32 %v175, 0.0
        %v208 = vmax.f32 %v176, 0.0
        %v209 = vmax.f32 %v177, 0.0
        %v210 = vmax.f32 %v178, 0.0
        %v211 = vmax.f32 %v179, 0.0
        %v212 = vmax.f32 %v180, 0.0
        %v213 = vmax.f32 %v181, 0.0
        %v214 = vmax.f32 %v182, 0.0
        %v215 = vmax.f32 %v183, 0.0
        %v216 = vmax.f32 %v184, 0.0
        %v217 = vmax.f32 %v185, 0.0
        %v218 = vmax.f32 %v186, 0.0
        %219 = vst [vmem:[%s142] sm:$0xff] %v187
        %220 = vst [vmem:[%s142 + $0x8] sm:$0xff] %v188
        %221 = vst [vmem:[%s142 + $0x10] sm:$0xff] %v189
        %222 = vst [vmem:[%s142 + $0x18] sm:$0xff] %v190
        %223 = vst [vmem:[%s142 + $0x20] sm:$0xff] %v191
        %224 = vst [vmem:[%s142 + $0x28] sm:$0xff] %v192
        %225 = vst [vmem:[%s142 + $0x30] sm:$0xff] %v193
        %226 = vst [vmem:[%s142 + $0x38] sm:$0xff] %v194
        %227 = vst [vmem:[%s142 + $0x40] sm:$0xff] %v195
        %228 = vst [vmem:[%s142 + $0x48] sm:$0xff] %v196
        %229 = vst [vmem:[%s142 + $0x50] sm:$0xff] %v197
        %230 = vst [vmem:[%s142 + $0x58] sm:$0xff] %v198
        %231 = vst [vmem:[%s142 + $0x60] sm:$0xff] %v199
        %232 = vst [vmem:[%s142 + $0x68] sm:$0xff] %v200
        %233 = vst [vmem:[%s142 + $0x70] sm:$0xff] %v201
        %234 = vst [vmem:[%s142 + $0x78] sm:$0xff] %v202
        %235 = vst [vmem:[%s142 + $0x80] sm:$0xff] %v203
        %236 = vst [vmem:[%s142 + $0x88] sm:$0xff] %v204
        %237 = vst [vmem:[%s142 + $0x90] sm:$0xff] %v205
        %238 = vst [vmem:[%s142 + $0x98] sm:$0xff] %v206
        %239 = vst [vmem:[%s142 + $0xa0] sm:$0xff] %v207
        %240 = vst [vmem:[%s142 + $0xa8] sm:$0xff] %v208
        %241 = vst [vmem:[%s142 + $0xb0] sm:$0xff] %v209
        %242 = vst [vmem:[%s142 + $0xb8] sm:$0xff] %v210
        %243 = vst [vmem:[%s142 + $0xc0] sm:$0xff] %v211
        %244 = vst [vmem:[%s142 + $0xc8] sm:$0xff] %v212
        %245 = vst [vmem:[%s142 + $0xd0] sm:$0xff] %v213
        %246 = vst [vmem:[%s142 + $0xd8] sm:$0xff] %v214
        %247 = vst [vmem:[%s142 + $0xe0] sm:$0xff] %v215
        %248 = vst [vmem:[%s142 + $0xe8] sm:$0xff] %v216
        %249 = vst [vmem:[%s142 + $0xf0] sm:$0xff] %v217
        %250 = vst [vmem:[%s142 + $0xf8] sm:$0xff] %v218
        %s251 = sand.u32 %s52, 1
        %s252 = scalar_lea.sflag [#allocation4], %s251
        %s253 = sand.u32 %s52, 1
        %s254 = smul.addr %s253, 256
        %s255 = scalar_lea.vmem [#allocation5], %s254
        // Predicated region
        $region29: #{tpu_custom_call.1} parent=23 // pred_check
          %p256 = pneg %p62
        $region30: #{tpu_custom_call.1} parent=23 // pred_check_branch
          %258 = sbr.rel (%p256) target = $region32
        $region31: #{tpu_custom_call.1} parent=23 // pred_region
          %s259 = smul.u32 4, %s18
          %s260 = ssub.s32 7, %s259
          %p261 = scmp.lt.s32.totalorder %s260, 4
          %s262 = scalar_select %p261, %s260, 4
          %s263 = smul.u32 128, %s262
          %s264 = smul.u32 %s263, 8
          %s266 = ssub.s32 4096, %s264
          %267 = vsyncadd %s252, %s266
          %p268 = scmp.ne.s32.totalorder 0, %s264
          %s269 = smul.addr %s259, 8
          %s270 = smul.addr %s269, 128
          %s271 = scalar_lea.hbm %s1, %s270
          %s272 = smul.u32 64, %s262
          %s273 = sshll.u32 %s255, 4
          %s274 = int_to_ptr.vmem [resolvable:$true] %s273
          %s275 = sshll.u32 %s272, 4
          %279 = dma.vmem_to_hbm [thread:$0]  (%p268), %s274, %s275, %s271, %s252, 1024, 1024, 64
        $region32: #{tpu_custom_call.1} parent=23 // pred_fallthru
          _
      $region24: #{tpu_custom_call.1} parent=5 // pred_fallthru
        _
      %p280 = scmp.le.s32.totalorder 2, %s13
      // Predicated region
      $region33: #{tpu_custom_call.1} parent=5 // pred_check
        %p281 = pneg %p280
      $region34: #{tpu_custom_call.1} parent=5 // pred_check_branch
        %283 = sbr.rel (%p281) target = $region36
      $region35: #{tpu_custom_call.1} parent=5 // pred_region
        %s284 = ssub.s32 %s13, 2
        // Predicated region
        $region37: #{tpu_custom_call.1} parent=35 // pred_check
          %p285 = pneg %p68
        $region38: #{tpu_custom_call.1} parent=35 // pred_check_branch
          %287 = sbr.rel (%p285) target = $region40
        $region39: #{tpu_custom_call.1} parent=35 // pred_region
          %s288 = sand.u32 %s53, 1
          %s289 = scalar_lea.sflag [#allocation4], %s288
          %s290 = sand.u32 %s53, 1
          %s291 = smul.addr %s290, 256
          %s292 = scalar_lea.vmem [#allocation5], %s291
          %293 = dma.done %s289, 4096
        $region40: #{tpu_custom_call.1} parent=35 // pred_fallthru
          _
      $region36: #{tpu_custom_call.1} parent=5 // pred_fallthru
        _
    $region6: #{tpu_custom_call.1} parent=1 // loop_footer
      %s17 = sadd.s32 1, %s13
    $region7: #{tpu_custom_call.1} parent=1 // loop_footer_branch
      %12 = sbr.rel target = $region3
    $region8: #{tpu_custom_call.1} parent=1 // loop_exit
      _
    %294 = vsyncpa [#allocation3], 1
    %s295 = scalar_lea.sflag [#allocation3], 1
    %296 = vsyncpa %s295, 1
    %297 = vsyncpa [#allocation4], 1
    %s298 = scalar_lea.sflag [#allocation4], 1
    %299 = vsyncpa %s298, 1

</llo_original>
